<compile_context>
chip_gen: v7x
topology: tpu7x:2x2x1
jax: 0.10.0
libtpu: 0.0.40
codegen_flags: <defaults>
</compile_context>

<pallas_src>
import functools

import jax
import jax.numpy as jnp
from jax.experimental import pallas as pl
from jax.experimental.pallas import tpu as pltpu


def _attn_core(x_bf16, vres_ref, gamma, beta, wqkv, wout, out_ref, vout_ref,
               o_scratch, *, heads, dim_head):
    """Single batch element.

    x_bf16  : (N, D) bf16 pre-norm activations
    vres_ref: ref with block (1, H, N, Dh) bf16, or None
    wqkv    : (D, 3*inner) bf16, softmax scale pre-folded into the q columns
    wout    : (inner, D) bf16
    Writes out_ref[0] (N, D) f32 and vout_ref[0] (H, N, Dh) bf16.
    """
    n, dim = x_bf16.shape
    inner = heads * dim_head

    # --- LayerNorm (eps=1e-5, elementwise affine); stats & math in f32 ---
    x = x_bf16.astype(jnp.float32)
    mu = jnp.mean(x, axis=-1, keepdims=True)
    var = jnp.mean((x - mu) ** 2, axis=-1, keepdims=True)
    xn = (x - mu) * jax.lax.rsqrt(var + 1e-5)
    xn = xn * gamma + beta

    # --- QKV projection (no bias): bf16 operands, f32 accumulation ---
    qkv = jnp.dot(xn.astype(jnp.bfloat16), wqkv,
                  preferred_element_type=jnp.float32)            # (N, 3*inner)

    # --- per-head attention; o_h staged into a lane-dense bf16 scratch ---
    for h in range(heads):
        a = h * dim_head
        sl = slice(a, a + dim_head)
        q_h = qkv[:, a:a + dim_head].astype(jnp.bfloat16)               # (N,Dh)
        k_h = qkv[:, inner + a:inner + a + dim_head].astype(jnp.bfloat16)
        v_h = qkv[:, 2 * inner + a:2 * inner + a + dim_head]            # f32

        # value-residual mix (non-learned => constant 0.5)
        if vres_ref is not None:
            v_h = 0.5 * v_h + 0.5 * vres_ref[0, h].astype(jnp.float32)
        vout_ref[0, h] = v_h.astype(jnp.bfloat16)

        # q @ k^T, contracting last dims (no physical transpose); softmax scale
        # is already folded into wqkv's q columns.
        dots = jax.lax.dot_general(q_h, k_h, (((1,), (1,)), ((), ())),
                                   preferred_element_type=jnp.float32)  # (N,N)
        dots = dots - jnp.max(dots, axis=-1, keepdims=True)
        e = jnp.exp(dots)
        denom = jnp.sum(e, axis=-1, keepdims=True)                       # (N,1)

        # Normalize AFTER PV: N*Dh multiplies instead of N*N; exact reciprocal
        # (only N values per head).
        o_h = jnp.dot(e.astype(jnp.bfloat16), v_h.astype(jnp.bfloat16),
                      preferred_element_type=jnp.float32)                # (N,Dh)
        o_scratch[:, sl] = (o_h * (1.0 / denom)).astype(jnp.bfloat16)

    # --- single merged output projection: one matmul with K = inner ---
    out_ref[0] = jnp.dot(o_scratch[...], wout,
                         preferred_element_type=jnp.float32)             # (N,D)


def _attn_kernel_novres(x_ref, gamma_ref, beta_ref, wqkv_ref, wout_ref,
                        out_ref, vout_ref, o_scratch, *, heads, dim_head):
    _attn_core(x_ref[0], None, gamma_ref[...], beta_ref[...],
               wqkv_ref[...], wout_ref[...], out_ref, vout_ref, o_scratch,
               heads=heads, dim_head=dim_head)


def _attn_kernel_vres(x_ref, vres_ref, gamma_ref, beta_ref, wqkv_ref, wout_ref,
                      out_ref, vout_ref, o_scratch, *, heads, dim_head):
    _attn_core(x_ref[0], vres_ref, gamma_ref[...], beta_ref[...],
               wqkv_ref[...], wout_ref[...], out_ref, vout_ref, o_scratch,
               heads=heads, dim_head=dim_head)


def _vmem_limit_bytes():
    try:
        kind = jax.devices()[0].device_kind.lower()
    except Exception:
        kind = ""
    # v7x: 64 MiB physical VMEM per TC -> keep headroom.
    # v5e/v6e: 128 MiB physical -> the 32 MiB scoped default is artificially tight.
    return 48 * 1024 * 1024 if "v7" in kind else 64 * 1024 * 1024


def prepare_attention_params(params, *, heads, dim_head):
    """One-time host-side weight prep, hoisted out of the per-call path:
    transpose, cast to bf16, and fold the softmax scale into wqkv's q columns."""
    inner = heads * dim_head
    scale = dim_head ** -0.5
    w_qkv = jnp.asarray(params['w_qkv'], jnp.float32)            # (3*inner, D)
    dim = w_qkv.shape[1]
    w_qkv_t = w_qkv.T                                            # (D, 3*inner)
    w_qkv_t = w_qkv_t.at[:, :inner].multiply(scale)              # fold scale into q
    return {
        'wqkv_t': w_qkv_t.astype(jnp.bfloat16),                  # (D, 3*inner)
        'wout_t': jnp.asarray(params['w_out'], jnp.float32).T.astype(jnp.bfloat16),
        'gamma': jnp.asarray(params['gamma'], jnp.float32).reshape(1, dim),
        'beta': jnp.asarray(params['beta'], jnp.float32).reshape(1, dim),
    }


@functools.partial(jax.jit, static_argnames=('heads', 'dim_head'))
def attention_forward(x, prepped, value_residual=None, *, heads, dim_head):
    """Returns (out (B,N,D) f32, v (B,H,N,Dh) bf16) matching the PyTorch module
    `(to_out(out), v)`. The v output is bf16 by design (numeric contract)."""
    B, N, D = x.shape
    inner = heads * dim_head
    Dh = dim_head

    x_bf16 = x.astype(jnp.bfloat16)                              # halve input DMA

    out_shapes = (jax.ShapeDtypeStruct((B, N, D), jnp.float32),
                  jax.ShapeDtypeStruct((B, heads, N, Dh), jnp.bfloat16))
    out_specs = [pl.BlockSpec((1, N, D), lambda b: (b, 0, 0)),
                 pl.BlockSpec((1, heads, N, Dh), lambda b: (b, 0, 0, 0))]
    # Grid-invariant params: constant index_map -> fetched once, reused each step.
    weight_specs = [pl.BlockSpec((1, D), lambda b: (0, 0)),
                    pl.BlockSpec((1, D), lambda b: (0, 0)),
                    pl.BlockSpec((D, 3 * inner), lambda b: (0, 0)),
                    pl.BlockSpec((inner, D), lambda b: (0, 0))]
    scratch = [pltpu.VMEM((N, inner), jnp.bfloat16)]             # merged o_h slab
    cparams = pltpu.CompilerParams(dimension_semantics=("parallel",),
                                   vmem_limit_bytes=_vmem_limit_bytes())

    flops = B * (2 * N * D * 3 * inner              # qkv projection
                 + heads * 4 * N * N * Dh           # QK^T + PV
                 + 2 * N * inner * D)               # output projection
    transcendentals = B * heads * N * N
    bytes_accessed = (B * N * D * 2                                   # x (bf16)
                      + (D * 3 * inner + inner * D) * 2 + 2 * D * 4   # weights
                      + B * N * D * 4 + B * N * inner * 2             # outputs
                      + (B * N * inner * 2 if value_residual is not None else 0))
    cost = pl.CostEstimate(flops=flops, transcendentals=transcendentals,
                           bytes_accessed=bytes_accessed)

    weights = (prepped['gamma'], prepped['beta'],
               prepped['wqkv_t'], prepped['wout_t'])

    if value_residual is None:
        kernel = functools.partial(_attn_kernel_novres, heads=heads, dim_head=Dh)
        out, v = pl.pallas_call(
            kernel,
            out_shape=out_shapes,
            grid=(B,),
            in_specs=[pl.BlockSpec((1, N, D), lambda b: (b, 0, 0))] + weight_specs,
            out_specs=out_specs,
            scratch_shapes=scratch,
            compiler_params=cparams,
            cost_estimate=cost,
        )(x_bf16, *weights)
    else:
        # Consumed directly in the module-native (B, H, N, Dh) layout -> no host
        # transpose round trip; bf16 halves its DMA.
        vres_bf16 = value_residual.astype(jnp.bfloat16)
        kernel = functools.partial(_attn_kernel_vres, heads=heads, dim_head=Dh)
        out, v = pl.pallas_call(
            kernel,
            out_shape=out_shapes,
            grid=(B,),
            in_specs=[pl.BlockSpec((1, N, D), lambda b: (b, 0, 0)),
                      pl.BlockSpec((1, heads, N, Dh), lambda b: (b, 0, 0, 0))]
                     + weight_specs,
            out_specs=out_specs,
            scratch_shapes=scratch,
            compiler_params=cparams,
            cost_estimate=cost,
        )(x_bf16, vres_bf16, *weights)

    return out, v


def _reference(x, params, value_residual, heads, dim_head):
    """Pure-JAX f32 reference matching the PyTorch forward."""
    B, N, D = x.shape
    inner = heads * dim_head
    mu = x.mean(-1, keepdims=True)
    var = ((x - mu) ** 2).mean(-1, keepdims=True)
    xn = (x - mu) / jnp.sqrt(var + 1e-5) * params['gamma'] + params['beta']
    qkv = xn @ params['w_qkv'].T
    q, k, v = jnp.split(qkv, 3, axis=-1)

    def to_heads(t):
        return t.reshape(B, N, heads, dim_head).transpose(0, 2, 1, 3)

    q, k, v = map(to_heads, (q, k, v))
    if value_residual is not None:
        v = v * 0.5 + value_residual * 0.5
    dots = jnp.einsum('bhnd,bhmd->bhnm', q, k) * dim_head ** -0.5
    attn = jax.nn.softmax(dots, axis=-1)
    o = jnp.einsum('bhnm,bhmd->bhnd', attn, v)
    o = o.transpose(0, 2, 1, 3).reshape(B, N, inner)
    return o @ params['w_out'].T, v


if __name__ == "__main__":
    # Small, lane-aligned synthetic shapes: batch=2, seq=16, dim=128,
    # heads=2, dim_head=64 (module default head size) -> inner=128.
    B, N, D = 2, 16, 128
    HEADS, DIM_HEAD = 2, 64
    INNER = HEADS * DIM_HEAD

    key = jax.random.PRNGKey(0)
    k_x, k_qkv, k_out, k_vr = jax.random.split(key, 4)

    x = jax.random.normal(k_x, (B, N, D), jnp.float32)
    params = {
        'gamma': jnp.ones((D,), jnp.float32),
        'beta': jnp.zeros((D,), jnp.float32),
        'w_qkv': 0.02 * jax.random.normal(k_qkv, (3 * INNER, D), jnp.float32),
        'w_out': 0.02 * jax.random.normal(k_out, (D, INNER), jnp.float32),
    }
    value_residual = jax.random.normal(k_vr, (B, HEADS, N, DIM_HEAD), jnp.float32)

    prepped = prepare_attention_params(params, heads=HEADS, dim_head=DIM_HEAD)

    # Case 1: no value residual
    out1, v1 = attention_forward(x, prepped, None, heads=HEADS, dim_head=DIM_HEAD)
    # Case 2: with value residual (mix = 0.5, non-learned)
    out2, v2 = attention_forward(x, prepped, value_residual,
                                 heads=HEADS, dim_head=DIM_HEAD)
    jax.block_until_ready((out1, v1, out2, v2))

    ref_out1, ref_v1 = _reference(x, params, None, HEADS, DIM_HEAD)
    ref_out2, ref_v2 = _reference(x, params, value_residual, HEADS, DIM_HEAD)

    # Kernel uses bf16 inputs / matmul operands with f32 accumulation and a
    # bf16 v output; reference is pure f32 -> relaxed tolerance.
    tol = dict(atol=2e-2, rtol=2e-2)
    assert jnp.allclose(out1, ref_out1, **tol)
    assert jnp.allclose(v1.astype(jnp.float32), ref_v1, **tol)
    assert jnp.allclose(out2, ref_out2, **tol)
    assert jnp.allclose(v2.astype(jnp.float32), ref_v2, **tol)

    print("KERNEL_OK")
</pallas_src>

<mosaic_0001>
module attributes {stable_mosaic.version = 11 : i64} {
  func.func @_attn_kernel_novres(%arg0: i32, %arg1: memref<1x16x128xbf16, #tpu.memory_space<vmem>>, %arg2: memref<1x128xf32, #tpu.memory_space<vmem>>, %arg3: memref<1x128xf32, #tpu.memory_space<vmem>>, %arg4: memref<128x384xbf16, #tpu.memory_space<vmem>>, %arg5: memref<128x128xbf16, #tpu.memory_space<vmem>>, %arg6: memref<1x16x128xf32, #tpu.memory_space<vmem>>, %arg7: memref<1x2x16x64xbf16, #tpu.memory_space<vmem>>, %arg8: memref<16x128xbf16, #tpu.memory_space<vmem>>) attributes {dimension_semantics = [#tpu.dimension_semantics<parallel>], iteration_bounds = array<i64: 2>, scalar_prefetch = 0 : i64, scratch_operands = 1 : i64, tpu.core_type = #tpu.core_type<tc>, window_params = [{transform_indices = @transform_0, window_bounds = array<i64: 1, 16, 128>}, {pipeline_mode = #tpu.pipeline_mode<synchronous>, transform_indices = @transform_1, window_bounds = array<i64: 1, 128>}, {pipeline_mode = #tpu.pipeline_mode<synchronous>, transform_indices = @transform_2, window_bounds = array<i64: 1, 128>}, {pipeline_mode = #tpu.pipeline_mode<synchronous>, transform_indices = @transform_3, window_bounds = array<i64: 128, 384>}, {pipeline_mode = #tpu.pipeline_mode<synchronous>, transform_indices = @transform_4, window_bounds = array<i64: 128, 128>}, {transform_indices = @transform_5, window_bounds = array<i64: 1, 16, 128>}, {transform_indices = @transform_6, window_bounds = array<i64: 1, 2, 16, 64>}]} {
    %c0 = arith.constant 0 : index
    %c0_0 = arith.constant 0 : index
    %c0_1 = arith.constant 0 : index
    %0 = vector.load %arg1[%c0, %c0_0, %c0_1] : memref<1x16x128xbf16, #tpu.memory_space<vmem>>, vector<1x16x128xbf16>
    %1 = vector.shape_cast %0 : vector<1x16x128xbf16> to vector<16x128xbf16>
    %c0_2 = arith.constant 0 : index
    %c0_3 = arith.constant 0 : index
    %2 = vector.load %arg2[%c0_2, %c0_3] : memref<1x128xf32, #tpu.memory_space<vmem>>, vector<1x128xf32>
    %c0_4 = arith.constant 0 : index
    %c0_5 = arith.constant 0 : index
    %3 = vector.load %arg3[%c0_4, %c0_5] : memref<1x128xf32, #tpu.memory_space<vmem>>, vector<1x128xf32>
    %c0_6 = arith.constant 0 : index
    %c0_7 = arith.constant 0 : index
    %4 = vector.load %arg4[%c0_6, %c0_7] : memref<128x384xbf16, #tpu.memory_space<vmem>>, vector<128x384xbf16>
    %c0_8 = arith.constant 0 : index
    %c0_9 = arith.constant 0 : index
    %5 = vector.load %arg5[%c0_8, %c0_9] : memref<128x128xbf16, #tpu.memory_space<vmem>>, vector<128x128xbf16>
    %6 = arith.extf %1 : vector<16x128xbf16> to vector<16x128xf32>
    %cst = arith.constant dense<0.000000e+00> : vector<16xf32>
    %7 = vector.multi_reduction <add>, %6, %cst [1] : vector<16x128xf32> to vector<16xf32>
    %8 = vector.shape_cast %7 : vector<16xf32> to vector<16x1xf32>
    %cst_10 = arith.constant 1.280000e+02 : f32
    %9 = vector.broadcast %cst_10 : f32 to vector<16x1xf32>
    %10 = arith.divf %8, %9 : vector<16x1xf32>
    %11 = vector.broadcast %10 : vector<16x1xf32> to vector<16x128xf32>
    %12 = arith.subf %6, %11 : vector<16x128xf32>
    %13 = arith.mulf %12, %12 : vector<16x128xf32>
    %cst_11 = arith.constant dense<0.000000e+00> : vector<16xf32>
    %14 = vector.multi_reduction <add>, %13, %cst_11 [1] : vector<16x128xf32> to vector<16xf32>
    %15 = vector.shape_cast %14 : vector<16xf32> to vector<16x1xf32>
    %cst_12 = arith.constant 1.280000e+02 : f32
    %16 = vector.broadcast %cst_12 : f32 to vector<16x1xf32>
    %17 = arith.divf %15, %16 : vector<16x1xf32>
    %18 = vector.broadcast %10 : vector<16x1xf32> to vector<16x128xf32>
    %19 = arith.subf %6, %18 : vector<16x128xf32>
    %cst_13 = arith.constant 9.99999974E-6 : f32
    %20 = vector.broadcast %cst_13 : f32 to vector<16x1xf32>
    %21 = arith.addf %17, %20 : vector<16x1xf32>
    %22 = math.rsqrt %21 : vector<16x1xf32>
    %23 = vector.broadcast %22 : vector<16x1xf32> to vector<16x128xf32>
    %24 = arith.mulf %19, %23 : vector<16x128xf32>
    %25 = vector.broadcast %2 : vector<1x128xf32> to vector<16x128xf32>
    %26 = arith.mulf %24, %25 : vector<16x128xf32>
    %27 = vector.broadcast %3 : vector<1x128xf32> to vector<16x128xf32>
    %28 = arith.addf %26, %27 : vector<16x128xf32>
    %29 = arith.truncf %28 : vector<16x128xf32> to vector<16x128xbf16>
    %cst_14 = arith.constant dense<0.000000e+00> : vector<16x384xf32>
    %30 = tpu.matmul %29, %4, %cst_14 {dimension_numbers = #tpu.dot_dimension_numbers<[1], [0], [0], [1], [0, 0, 1, 1], [], []>} : vector<16x128xbf16>, vector<128x384xbf16>, vector<16x384xf32> -> vector<16x384xf32>
    %31 = vector.extract_strided_slice %30 {offsets = [0, 0], sizes = [16, 64], strides = [1, 1]} : vector<16x384xf32> to vector<16x64xf32>
    %32 = arith.truncf %31 : vector<16x64xf32> to vector<16x64xbf16>
    %33 = vector.extract_strided_slice %30 {offsets = [0, 128], sizes = [16, 64], strides = [1, 1]} : vector<16x384xf32> to vector<16x64xf32>
    %34 = arith.truncf %33 : vector<16x64xf32> to vector<16x64xbf16>
    %35 = vector.extract_strided_slice %30 {offsets = [0, 256], sizes = [16, 64], strides = [1, 1]} : vector<16x384xf32> to vector<16x64xf32>
    %36 = arith.truncf %35 : vector<16x64xf32> to vector<16x64xbf16>
    %c0_15 = arith.constant 0 : index
    %c0_16 = arith.constant 0 : index
    %c0_17 = arith.constant 0 : index
    %c0_18 = arith.constant 0 : index
    %37 = vector.load %arg7[%c0_15, %c0_16, %c0_17, %c0_18] : memref<1x2x16x64xbf16, #tpu.memory_space<vmem>>, vector<1x1x16x64xbf16>
    %38 = vector.shape_cast %37 : vector<1x1x16x64xbf16> to vector<16x64xbf16>
    %39 = vector.shape_cast %36 : vector<16x64xbf16> to vector<1x1x16x64xbf16>
    tpu.vector_store %arg7[%c0_15, %c0_16, %c0_17, %c0_18], %39 {strides = array<i32>} : memref<1x2x16x64xbf16, #tpu.memory_space<vmem>>, vector<1x1x16x64xbf16>,
    %cst_19 = arith.constant dense<0.000000e+00> : vector<16x16xf32>
    %40 = tpu.matmul %32, %34, %cst_19 {dimension_numbers = #tpu.dot_dimension_numbers<[1], [1], [0], [0], [0, 0, 1, 0], [], []>} : vector<16x64xbf16>, vector<16x64xbf16>, vector<16x16xf32> -> vector<16x16xf32>
    %cst_20 = arith.constant dense<0xFF800000> : vector<16xf32>
    %41 = vector.multi_reduction <maximumf>, %40, %cst_20 [1] : vector<16x16xf32> to vector<16xf32>
    %42 = vector.shape_cast %41 : vector<16xf32> to vector<16x1xf32>
    %43 = vector.broadcast %42 : vector<16x1xf32> to vector<16x16xf32>
    %44 = arith.subf %40, %43 : vector<16x16xf32>
    %45 = math.exp %44 : vector<16x16xf32>
    %cst_21 = arith.constant dense<0.000000e+00> : vector<16xf32>
    %46 = vector.multi_reduction <add>, %45, %cst_21 [1] : vector<16x16xf32> to vector<16xf32>
    %47 = vector.shape_cast %46 : vector<16xf32> to vector<16x1xf32>
    %48 = arith.truncf %45 : vector<16x16xf32> to vector<16x16xbf16>
    %49 = arith.truncf %35 : vector<16x64xf32> to vector<16x64xbf16>
    %cst_22 = arith.constant dense<0.000000e+00> : vector<16x64xf32>
    %50 = tpu.matmul %48, %49, %cst_22 {dimension_numbers = #tpu.dot_dimension_numbers<[1], [0], [0], [1], [0, 0, 1, 1], [], []>} : vector<16x16xbf16>, vector<16x64xbf16>, vector<16x64xf32> -> vector<16x64xf32>
    %cst_23 = arith.constant 1.000000e+00 : f32
    %51 = vector.broadcast %cst_23 : f32 to vector<16x1xf32>
    %52 = arith.divf %51, %47 : vector<16x1xf32>
    %53 = vector.broadcast %52 : vector<16x1xf32> to vector<16x64xf32>
    %54 = arith.mulf %50, %53 : vector<16x64xf32>
    %55 = arith.truncf %54 : vector<16x64xf32> to vector<16x64xbf16>
    %c0_24 = arith.constant 0 : index
    %c0_25 = arith.constant 0 : index
    %56 = vector.load %arg8[%c0_24, %c0_25] : memref<16x128xbf16, #tpu.memory_space<vmem>>, vector<16x64xbf16>
    tpu.vector_store %arg8[%c0_24, %c0_25], %55 {strides = array<i32>} : memref<16x128xbf16, #tpu.memory_space<vmem>>, vector<16x64xbf16>,
    %57 = vector.extract_strided_slice %30 {offsets = [0, 64], sizes = [16, 64], strides = [1, 1]} : vector<16x384xf32> to vector<16x64xf32>
    %58 = arith.truncf %57 : vector<16x64xf32> to vector<16x64xbf16>
    %59 = vector.extract_strided_slice %30 {offsets = [0, 192], sizes = [16, 64], strides = [1, 1]} : vector<16x384xf32> to vector<16x64xf32>
    %60 = arith.truncf %59 : vector<16x64xf32> to vector<16x64xbf16>
    %61 = vector.extract_strided_slice %30 {offsets = [0, 320], sizes = [16, 64], strides = [1, 1]} : vector<16x384xf32> to vector<16x64xf32>
    %62 = arith.truncf %61 : vector<16x64xf32> to vector<16x64xbf16>
    %c0_26 = arith.constant 0 : index
    %c1 = arith.constant 1 : index
    %c0_27 = arith.constant 0 : index
    %c0_28 = arith.constant 0 : index
    %63 = vector.load %arg7[%c0_26, %c1, %c0_27, %c0_28] : memref<1x2x16x64xbf16, #tpu.memory_space<vmem>>, vector<1x1x16x64xbf16>
    %64 = vector.shape_cast %63 : vector<1x1x16x64xbf16> to vector<16x64xbf16>
    %65 = vector.shape_cast %62 : vector<16x64xbf16> to vector<1x1x16x64xbf16>
    tpu.vector_store %arg7[%c0_26, %c1, %c0_27, %c0_28], %65 {strides = array<i32>} : memref<1x2x16x64xbf16, #tpu.memory_space<vmem>>, vector<1x1x16x64xbf16>,
    %cst_29 = arith.constant dense<0.000000e+00> : vector<16x16xf32>
    %66 = tpu.matmul %58, %60, %cst_29 {dimension_numbers = #tpu.dot_dimension_numbers<[1], [1], [0], [0], [0, 0, 1, 0], [], []>} : vector<16x64xbf16>, vector<16x64xbf16>, vector<16x16xf32> -> vector<16x16xf32>
    %cst_30 = arith.constant dense<0xFF800000> : vector<16xf32>
    %67 = vector.multi_reduction <maximumf>, %66, %cst_30 [1] : vector<16x16xf32> to vector<16xf32>
    %68 = vector.shape_cast %67 : vector<16xf32> to vector<16x1xf32>
    %69 = vector.broadcast %68 : vector<16x1xf32> to vector<16x16xf32>
    %70 = arith.subf %66, %69 : vector<16x16xf32>
    %71 = math.exp %70 : vector<16x16xf32>
    %cst_31 = arith.constant dense<0.000000e+00> : vector<16xf32>
    %72 = vector.multi_reduction <add>, %71, %cst_31 [1] : vector<16x16xf32> to vector<16xf32>
    %73 = vector.shape_cast %72 : vector<16xf32> to vector<16x1xf32>
    %74 = arith.truncf %71 : vector<16x16xf32> to vector<16x16xbf16>
    %75 = arith.truncf %61 : vector<16x64xf32> to vector<16x64xbf16>
    %cst_32 = arith.constant dense<0.000000e+00> : vector<16x64xf32>
    %76 = tpu.matmul %74, %75, %cst_32 {dimension_numbers = #tpu.dot_dimension_numbers<[1], [0], [0], [1], [0, 0, 1, 1], [], []>} : vector<16x16xbf16>, vector<16x64xbf16>, vector<16x64xf32> -> vector<16x64xf32>
    %cst_33 = arith.constant 1.000000e+00 : f32
    %77 = vector.broadcast %cst_33 : f32 to vector<16x1xf32>
    %78 = arith.divf %77, %73 : vector<16x1xf32>
    %79 = vector.broadcast %78 : vector<16x1xf32> to vector<16x64xf32>
    %80 = arith.mulf %76, %79 : vector<16x64xf32>
    %81 = arith.truncf %80 : vector<16x64xf32> to vector<16x64xbf16>
    %c0_34 = arith.constant 0 : index
    %c64 = arith.constant 64 : index
    %82 = vector.load %arg8[%c0_34, %c64] : memref<16x128xbf16, #tpu.memory_space<vmem>>, vector<16x64xbf16>
    tpu.vector_store %arg8[%c0_34, %c64], %81 {strides = array<i32>} : memref<16x128xbf16, #tpu.memory_space<vmem>>, vector<16x64xbf16>,
    %c0_35 = arith.constant 0 : index
    %c0_36 = arith.constant 0 : index
    %83 = vector.load %arg8[%c0_35, %c0_36] : memref<16x128xbf16, #tpu.memory_space<vmem>>, vector<16x128xbf16>
    %cst_37 = arith.constant dense<0.000000e+00> : vector<16x128xf32>
    %84 = tpu.matmul %83, %5, %cst_37 {dimension_numbers = #tpu.dot_dimension_numbers<[1], [0], [0], [1], [0, 0, 1, 1], [], []>} : vector<16x128xbf16>, vector<128x128xbf16>, vector<16x128xf32> -> vector<16x128xf32>
    %c0_38 = arith.constant 0 : index
    %c0_39 = arith.constant 0 : index
    %c0_40 = arith.constant 0 : index
    %85 = vector.load %arg6[%c0_38, %c0_39, %c0_40] : memref<1x16x128xf32, #tpu.memory_space<vmem>>, vector<1x16x128xf32>
    %86 = vector.shape_cast %85 : vector<1x16x128xf32> to vector<16x128xf32>
    %87 = vector.shape_cast %84 : vector<16x128xf32> to vector<1x16x128xf32>
    tpu.vector_store %arg6[%c0_38, %c0_39, %c0_40], %87 {strides = array<i32>} : memref<1x16x128xf32, #tpu.memory_space<vmem>>, vector<1x16x128xf32>,
    return
  }
  func.func @transform_0(%arg0: i32) -> (i32, i32, i32) {
    %c0_i32 = arith.constant 0 : i32
    %c0_i32_0 = arith.constant 0 : i32
    %c0_i32_1 = arith.constant 0 : i32
    return %arg0, %c0_i32, %c0_i32_0 : i32, i32, i32
  }
  func.func @transform_1(%arg0: i32) -> (i32, i32) {
    %c0_i32 = arith.constant 0 : i32
    %c0_i32_0 = arith.constant 0 : i32
    %c0_i32_1 = arith.constant 0 : i32
    return %c0_i32, %c0_i32_0 : i32, i32
  }
  func.func @transform_2(%arg0: i32) -> (i32, i32) {
    %c0_i32 = arith.constant 0 : i32
    %c0_i32_0 = arith.constant 0 : i32
    %c0_i32_1 = arith.constant 0 : i32
    return %c0_i32, %c0_i32_0 : i32, i32
  }
  func.func @transform_3(%arg0: i32) -> (i32, i32) {
    %c0_i32 = arith.constant 0 : i32
    %c0_i32_0 = arith.constant 0 : i32
    %c0_i32_1 = arith.constant 0 : i32
    return %c0_i32, %c0_i32_0 : i32, i32
  }
  func.func @transform_4(%arg0: i32) -> (i32, i32) {
    %c0_i32 = arith.constant 0 : i32
    %c0_i32_0 = arith.constant 0 : i32
    %c0_i32_1 = arith.constant 0 : i32
    return %c0_i32, %c0_i32_0 : i32, i32
  }
  func.func @transform_5(%arg0: i32) -> (i32, i32, i32) {
    %c0_i32 = arith.constant 0 : i32
    %c0_i32_0 = arith.constant 0 : i32
    %c0_i32_1 = arith.constant 0 : i32
    return %arg0, %c0_i32, %c0_i32_0 : i32, i32, i32
  }
  func.func @transform_6(%arg0: i32) -> (i32, i32, i32, i32) {
    %c0_i32 = arith.constant 0 : i32
    %c0_i32_0 = arith.constant 0 : i32
    %c0_i32_1 = arith.constant 0 : i32
    %c0_i32_2 = arith.constant 0 : i32
    return %arg0, %c0_i32, %c0_i32_0, %c0_i32_1 : i32, i32, i32, i32
  }
}

</mosaic_0001>

<llo_original>
// kernel: attention_forward.1
$region0: #{attention_forward.1}
  #allocation0 [shape = 'u32[]', space=smem, size = 0x4, offset = 0x4, fixed_abs, tag = 'smem constant byte address 0x4 - core index']
  #allocation1 [shape = 'u32[144,128]{1,0:T(1,128)}', space=vmem, size = 0x12000, scoped, tag = 'internal scratch']
  #allocation2 [shape = 'bf16[16,128]{1,0:T(16,128)(2,1)}', space=vmem, size = 0x1000, scoped, tag = 'scratch operand']
  %s0 = inlined_call_operand.hbm [shape: bf16[2,16,128], index: 0, kind: input, shape index: {}]
  %s1 = inlined_call_operand.hbm [shape: f32[1,128], index: 1, kind: input, shape index: {}]
  %s2 = inlined_call_operand.hbm [shape: f32[1,128], index: 2, kind: input, shape index: {}]
  %s3 = inlined_call_operand.hbm [shape: bf16[128,384], index: 3, kind: input, shape index: {}]
  %s4 = inlined_call_operand.hbm [shape: bf16[128,128], index: 4, kind: input, shape index: {}]
  %s5 = inlined_call_operand.hbm [shape: f32[2,16,128], index: 5, kind: output, shape index: {0}]
  %s6 = inlined_call_operand.hbm [shape: bf16[2,2,16,64], index: 6, kind: output, shape index: {1}]
  %7 = xla_tuple %s5, %s6
  %s8 = sld [smem:[#allocation0]]
  $region81: #{attention_forward.1} parent=0
    _
  %s10 = ssub.s32 1, %s8
  %s11 = scalar_select 0, %s10, %s8
  $region1: #{attention_forward.1} parent=0
    #allocation3 [shape = 'u8[8192]{0}', space=vmem, size = 0x2000, scoped, tag = 'input window, operand 0']
    #allocation4 [shape = 's32[2]{0}', space=sflag, size = 0x8, scoped, tag = 'scoped memory for attention_forward.1']
    #allocation5 [shape = 's32[2]{0}', space=sflag, size = 0x8, scoped, tag = 'scoped memory for attention_forward.1']
    #allocation6 [shape = 'u8[512]{0}', space=vmem, size = 0x400, scoped, tag = 'input window, operand 1, single buffered']
    #allocation7 [shape = 's32[1]{0}', space=sflag, size = 0x4, scoped, tag = 'scoped memory for attention_forward.1']
    #allocation8 [shape = 'u8[512]{0}', space=vmem, size = 0x400, scoped, tag = 'input window, operand 2, single buffered']
    #allocation9 [shape = 'u8[98304]{0}', space=vmem, size = 0x18000, scoped, tag = 'input window, operand 3, single buffered']
    #allocation10 [shape = 's32[1]{0}', space=sflag, size = 0x4, scoped, tag = 'scoped memory for attention_forward.1']
    #allocation11 [shape = 'u8[32768]{0}', space=vmem, size = 0x8000, scoped, tag = 'input window, operand 4, single buffered']
    #allocation12 [shape = 'u8[16384]{0}', space=vmem, size = 0x4000, scoped, tag = 'output window, operand 0']
    #allocation13 [shape = 'u8[16384]{0}', space=vmem, size = 0x4000, scoped, tag = 'output window, operand 1']
    #allocation14 [shape = 's32[2]{0}', space=sflag, size = 0x8, scoped, tag = 'scoped memory for attention_forward.1']
    %12 = vsyncpa [#allocation4], 0
    %s13 = scalar_lea.sflag [#allocation4], 1
    %14 = vsyncpa %s13, 0
    %15 = vsyncpa [#allocation7], 0
    %16 = vsyncpa [#allocation10], 0
    %17 = vsyncpa [#allocation5], 0
    %s18 = scalar_lea.sflag [#allocation5], 1
    %19 = vsyncpa %s18, 0
    %20 = vsyncpa [#allocation14], 0
    %s21 = scalar_lea.sflag [#allocation14], 1
    %22 = vsyncpa %s21, 0
    loop: start=0, step=1, limit=4
    $region2: #{attention_forward.1} parent=1 // loop_pre_header
      _
    $region3: #{attention_forward.1} parent=1 // loop_header
      %s24 = sphi 0, %s28
      %p25 = scmp.ge.s32.totalorder %s24, 4
      %s34 = sphi 0, %s36
      %s37 = sphi 0, %s34
      %s38 = sphi 0, %s37
      %s54 = sphi 0, %s38
      %s58 = sphi 0, %s58
      %s60 = sphi 0, %s58
      %s61 = sphi 0, %s60
      %s75 = sphi 0, %s61
      %s79 = sphi 0, %s79
      %s81 = sphi 0, %s79
      %s82 = sphi 0, %s81
      %s96 = sphi 0, %s82
      %s100 = sphi 0, %s100
      %s102 = sphi 0, %s100
      %s103 = sphi 0, %s102
      %s117 = sphi 0, %s103
      %s121 = sphi 0, %s121
      %s123 = sphi 0, %s121
      %s124 = sphi 0, %s123
      %s138 = sphi 0, %s124
      %s144 = sphi 0, %s146
      %s147 = sphi 0, %s144
      %s148 = sphi 0, %s147
      %s164 = sphi 0, %s148
      %s170 = sphi 0, %s172
      %s173 = sphi 0, %s170
      %s174 = sphi 0, %s173
      %s190 = sphi 0, %s174
    $region4: #{attention_forward.1} parent=1 // loop_header_branch
      %27 = sbr.rel (%p25) target = $region8
    $region5: #{attention_forward.1} parent=1 // loop_body
      %s29 = ssub.s32 %s24, 1
      %s30 = ssub.s32 %s24, 2
      %s31 = sadd.s32 %s24, 1
      %s32 = ssub.s32 %s24, %s31
      %p33 = scmp.eq.s32.totalorder %s32, 0
      %s35 = sadd.s32 %s34, 1
      %s36 = scalar_select %p33, %s34, %s35
      %p39 = pneg %p33
      %p40 = scmp.eq.s32.totalorder %s24, 1
      %p41 = por %p39, %p40
      %p42 = scmp.ne.s32.totalorder %s34, %s37
      %p43 = scmp.eq.s32.totalorder %s24, 0
      %p44 = por %p42, %p43
      %p45 = scmp.ne.s32.totalorder %s34, %s37
      %p46 = scmp.eq.s32.totalorder %s29, 1
      %p47 = por %p45, %p46
      %p48 = scmp.ne.s32.totalorder %s37, %s38
      %p49 = scmp.eq.s32.totalorder %s29, 0
      %p50 = por %p48, %p49
      %p51 = scmp.ne.s32.totalorder %s37, %s38
      %p52 = scmp.eq.s32.totalorder %s30, 1
      %p53 = por %p51, %p52
      %p55 = scmp.ne.s32.totalorder %s38, %s54
      %p56 = scmp.eq.s32.totalorder %s30, 0
      %p57 = por %p55, %p56
      %s59 = sadd.s32 %s58, 1
      %p62 = scmp.eq.s32.totalorder %s24, 1
      %p63 = scmp.ne.s32.totalorder %s58, %s60
      %p64 = scmp.eq.s32.totalorder %s24, 0
      %p65 = por %p63, %p64
      %p66 = scmp.ne.s32.totalorder %s58, %s60
      %p67 = scmp.eq.s32.totalorder %s29, 1
      %p68 = por %p66, %p67
      %p69 = scmp.ne.s32.totalorder %s60, %s61
      %p70 = scmp.eq.s32.totalorder %s29, 0
      %p71 = por %p69, %p70
      %p72 = scmp.ne.s32.totalorder %s60, %s61
      %p73 = scmp.eq.s32.totalorder %s30, 1
      %p74 = por %p72, %p73
      %p76 = scmp.ne.s32.totalorder %s61, %s75
      %p77 = scmp.eq.s32.totalorder %s30, 0
      %p78 = por %p76, %p77
      %s80 = sadd.s32 %s79, 1
      %p83 = scmp.eq.s32.totalorder %s24, 1
      %p84 = scmp.ne.s32.totalorder %s79, %s81
      %p85 = scmp.eq.s32.totalorder %s24, 0
      %p86 = por %p84, %p85
      %p87 = scmp.ne.s32.totalorder %s79, %s81
      %p88 = scmp.eq.s32.totalorder %s29, 1
      %p89 = por %p87, %p88
      %p90 = scmp.ne.s32.totalorder %s81, %s82
      %p91 = scmp.eq.s32.totalorder %s29, 0
      %p92 = por %p90, %p91
      %p93 = scmp.ne.s32.totalorder %s81, %s82
      %p94 = scmp.eq.s32.totalorder %s30, 1
      %p95 = por %p93, %p94
      %p97 = scmp.ne.s32.totalorder %s82, %s96
      %p98 = scmp.eq.s32.totalorder %s30, 0
      %p99 = por %p97, %p98
      %s101 = sadd.s32 %s100, 1
      %p104 = scmp.eq.s32.totalorder %s24, 1
      %p105 = scmp.ne.s32.totalorder %s100, %s102
      %p106 = scmp.eq.s32.totalorder %s24, 0
      %p107 = por %p105, %p106
      %p108 = scmp.ne.s32.totalorder %s100, %s102
      %p109 = scmp.eq.s32.totalorder %s29, 1
      %p110 = por %p108, %p109
      %p111 = scmp.ne.s32.totalorder %s102, %s103
      %p112 = scmp.eq.s32.totalorder %s29, 0
      %p113 = por %p111, %p112
      %p114 = scmp.ne.s32.totalorder %s102, %s103
      %p115 = scmp.eq.s32.totalorder %s30, 1
      %p116 = por %p114, %p115
      %p118 = scmp.ne.s32.totalorder %s103, %s117
      %p119 = scmp.eq.s32.totalorder %s30, 0
      %p120 = por %p118, %p119
      %s122 = sadd.s32 %s121, 1
      %p125 = scmp.eq.s32.totalorder %s24, 1
      %p126 = scmp.ne.s32.totalorder %s121, %s123
      %p127 = scmp.eq.s32.totalorder %s24, 0
      %p128 = por %p126, %p127
      %p129 = scmp.ne.s32.totalorder %s121, %s123
      %p130 = scmp.eq.s32.totalorder %s29, 1
      %p131 = por %p129, %p130
      %p132 = scmp.ne.s32.totalorder %s123, %s124
      %p133 = scmp.eq.s32.totalorder %s29, 0
      %p134 = por %p132, %p133
      %p135 = scmp.ne.s32.totalorder %s123, %s124
      %p136 = scmp.eq.s32.totalorder %s30, 1
      %p137 = por %p135, %p136
      %p139 = scmp.ne.s32.totalorder %s124, %s138
      %p140 = scmp.eq.s32.totalorder %s30, 0
      %p141 = por %p139, %p140
      %s142 = ssub.s32 %s24, %s31
      %p143 = scmp.eq.s32.totalorder %s142, 0
      %s145 = sadd.s32 %s144, 1
      %s146 = scalar_select %p143, %s144, %s145
      %p149 = pneg %p143
      %p150 = scmp.eq.s32.totalorder %s24, 1
      %p151 = por %p149, %p150
      %p152 = scmp.ne.s32.totalorder %s144, %s147
      %p153 = scmp.eq.s32.totalorder %s24, 0
      %p154 = por %p152, %p153
      %p155 = scmp.ne.s32.totalorder %s144, %s147
      %p156 = scmp.eq.s32.totalorder %s29, 1
      %p157 = por %p155, %p156
      %p158 = scmp.ne.s32.totalorder %s147, %s148
      %p159 = scmp.eq.s32.totalorder %s29, 0
      %p160 = por %p158, %p159
      %p161 = scmp.ne.s32.totalorder %s147, %s148
      %p162 = scmp.eq.s32.totalorder %s30, 1
      %p163 = por %p161, %p162
      %p165 = scmp.ne.s32.totalorder %s148, %s164
      %p166 = scmp.eq.s32.totalorder %s30, 0
      %p167 = por %p165, %p166
      %s168 = ssub.s32 %s24, %s31
      %p169 = scmp.eq.s32.totalorder %s168, 0
      %s171 = sadd.s32 %s170, 1
      %s172 = scalar_select %p169, %s170, %s171
      %p175 = pneg %p169
      %p176 = scmp.eq.s32.totalorder %s24, 1
      %p177 = por %p175, %p176
      %p178 = scmp.ne.s32.totalorder %s170, %s173
      %p179 = scmp.eq.s32.totalorder %s24, 0
      %p180 = por %p178, %p179
      %p181 = scmp.ne.s32.totalorder %s170, %s173
      %p182 = scmp.eq.s32.totalorder %s29, 1
      %p183 = por %p181, %p182
      %p184 = scmp.ne.s32.totalorder %s173, %s174
      %p185 = scmp.eq.s32.totalorder %s29, 0
      %p186 = por %p184, %p185
      %p187 = scmp.ne.s32.totalorder %s173, %s174
      %p188 = scmp.eq.s32.totalorder %s30, 1
      %p189 = por %p187, %p188
      %p191 = scmp.ne.s32.totalorder %s174, %s190
      %p192 = scmp.eq.s32.totalorder %s30, 0
      %p193 = por %p191, %p192
      %p194 = scmp.le.s32.totalorder 1, %s24
      %p195 = scmp.lt.s32.totalorder %s24, 3
      %p196 = pnand %p194, %p195
      %p197 = pneg %p196
      // Predicated region
      $region9: #{attention_forward.1} parent=5 // pred_check
        _
      $region10: #{attention_forward.1} parent=5 // pred_check_branch
        %199 = sbr.rel (%p196) target = $region12
      $region11: #{attention_forward.1} parent=5 // pred_region
        %s200 = ssub.s32 %s24, 1
        // Predicated region
        $region13: #{attention_forward.1} parent=11 // pred_check
          %p201 = pneg %p71
        $region14: #{attention_forward.1} parent=11 // pred_check_branch
          %203 = sbr.rel (%p201) target = $region16
        $region15: #{attention_forward.1} parent=11 // pred_region
          %s205 = ssub.s32 16, 16
          %206 = vsyncadd [#allocation7], %s205
          %s208 = sshll.u32 [#allocation6], 4
          %s209 = int_to_ptr.vmem [resolvable:$true] %s208
          %211 = dma.hbm_to_vmem [thread:$0]  %s1, 16, %s209, [#allocation7]
        $region16: #{attention_forward.1} parent=11 // pred_fallthru
          _
        // Predicated region
        $region17: #{attention_forward.1} parent=11 // pred_check
          %p212 = pneg %p92
        $region18: #{attention_forward.1} parent=11 // pred_check_branch
          %214 = sbr.rel (%p212) target = $region20
        $region19: #{attention_forward.1} parent=11 // pred_region
          %s216 = ssub.s32 16, 16
          %217 = vsyncadd [#allocation7], %s216
          %s219 = sshll.u32 [#allocation8], 4
          %s220 = int_to_ptr.vmem [resolvable:$true] %s219
          %222 = dma.hbm_to_vmem [thread:$0]  %s2, 16, %s220, [#allocation7]
        $region20: #{attention_forward.1} parent=11 // pred_fallthru
          _
        // Predicated region
        $region21: #{attention_forward.1} parent=11 // pred_check
          %p223 = pneg %p113
        $region22: #{attention_forward.1} parent=11 // pred_check_branch
          %225 = sbr.rel (%p223) target = $region24
        $region23: #{attention_forward.1} parent=11 // pred_region
          %s227 = ssub.s32 3072, 3072
          %228 = vsyncadd [#allocation10], %s227
          %s229 = sshll.u32 [#allocation9], 4
          %s230 = int_to_ptr.vmem [resolvable:$true] %s229
          %235 = dma.hbm_to_vmem [thread:$0]  %s3, 3072, %s230, [#allocation10], 192, 192, 12
        $region24: #{attention_forward.1} parent=11 // pred_fallthru
          _
        // Predicated region
        $region25: #{attention_forward.1} parent=11 // pred_check
          %p236 = pneg %p134
        $region26: #{attention_forward.1} parent=11 // pred_check_branch
          %238 = sbr.rel (%p236) target = $region28
        $region27: #{attention_forward.1} parent=11 // pred_region
          %s240 = ssub.s32 1024, 1024
          %241 = vsyncadd [#allocation10], %s240
          %s242 = sshll.u32 [#allocation11], 4
          %s243 = int_to_ptr.vmem [resolvable:$true] %s242
          %248 = dma.hbm_to_vmem [thread:$0]  %s4, 1024, %s243, [#allocation10], 64, 64, 4
        $region28: #{attention_forward.1} parent=11 // pred_fallthru
          _
      $region12: #{attention_forward.1} parent=5 // pred_fallthru
        _
      %p249 = scmp.lt.s32.totalorder %s24, 2
      // Predicated region
      $region29: #{attention_forward.1} parent=5 // pred_check
        %p250 = pneg %p249
      $region30: #{attention_forward.1} parent=5 // pred_check_branch
        %252 = sbr.rel (%p250) target = $region32
      $region31: #{attention_forward.1} parent=5 // pred_region
        // Predicated region
        $region33: #{attention_forward.1} parent=31 // pred_check
          %p253 = pneg %p44
        $region34: #{attention_forward.1} parent=31 // pred_check_branch
          %255 = sbr.rel (%p253) target = $region36
        $region35: #{attention_forward.1} parent=31 // pred_region
          %s256 = sand.u32 %s34, 1
          %s257 = scalar_lea.sflag [#allocation4], %s256
          %s258 = sand.u32 %s34, 1
          %s259 = smul.addr %s258, 8
          %s260 = scalar_lea.vmem [#allocation3], %s259
          %s262 = ssub.s32 128, 128
          %263 = vsyncadd %s257, %s262
          %s264 = smul.addr %s24, 2
          %s265 = smul.addr %s264, 64
          %s266 = scalar_lea.hbm %s0, %s265
          %s267 = sshll.u32 %s260, 4
          %s268 = int_to_ptr.vmem [resolvable:$true] %s267
          %273 = dma.hbm_to_vmem [thread:$0]  %s266, 128, %s268, %s257, 64, 64, 4
        $region36: #{attention_forward.1} parent=31 // pred_fallthru
          _
      $region32: #{attention_forward.1} parent=5 // pred_fallthru
        _
      %p274 = scmp.le.s32.totalorder 1, %s24
      %p275 = scmp.lt.s32.totalorder %s24, 3
      %p276 = pnand %p274, %p275
      %p277 = pneg %p276
      // Predicated region
      $region37: #{attention_forward.1} parent=5 // pred_check
        _
      $region38: #{attention_forward.1} parent=5 // pred_check_branch
        %279 = sbr.rel (%p276) target = $region40
      $region39: #{attention_forward.1} parent=5 // pred_region
        %s280 = ssub.s32 %s24, 1
        %s281 = sand.u32 %s37, 1
        %s282 = scalar_lea.sflag [#allocation4], %s281
        %s283 = sand.u32 %s37, 1
        %s284 = smul.addr %s283, 8
        %s285 = scalar_lea.vmem [#allocation3], %s284
        // Predicated region
        $region41: #{attention_forward.1} parent=39 // pred_check
          %p286 = pneg %p50
        $region42: #{attention_forward.1} parent=39 // pred_check_branch
          %288 = sbr.rel (%p286) target = $region44
        $region43: #{attention_forward.1} parent=39 // pred_region
          %289 = dma.done %s282, 128
        $region44: #{attention_forward.1} parent=39 // pred_fallthru
          _
        // Predicated region
        $region45: #{attention_forward.1} parent=39 // pred_check
          %p290 = pneg %p71
        $region46: #{attention_forward.1} parent=39 // pred_check_branch
          %292 = sbr.rel (%p290) target = $region48
        $region47: #{attention_forward.1} parent=39 // pred_region
          %293 = dma.done [#allocation7], 16
        $region48: #{attention_forward.1} parent=39 // pred_fallthru
          _
        // Predicated region
        $region49: #{attention_forward.1} parent=39 // pred_check
          %p294 = pneg %p92
        $region50: #{attention_forward.1} parent=39 // pred_check_branch
          %296 = sbr.rel (%p294) target = $region52
        $region51: #{attention_forward.1} parent=39 // pred_region
          %297 = dma.done [#allocation7], 16
        $region52: #{attention_forward.1} parent=39 // pred_fallthru
          _
        // Predicated region
        $region53: #{attention_forward.1} parent=39 // pred_check
          %p298 = pneg %p113
        $region54: #{attention_forward.1} parent=39 // pred_check_branch
          %300 = sbr.rel (%p298) target = $region56
        $region55: #{attention_forward.1} parent=39 // pred_region
          %301 = dma.done [#allocation10], 3072
        $region56: #{attention_forward.1} parent=39 // pred_fallthru
          _
        // Predicated region
        $region57: #{attention_forward.1} parent=39 // pred_check
          %p302 = pneg %p134
        $region58: #{attention_forward.1} parent=39 // pred_check_branch
          %304 = sbr.rel (%p302) target = $region60
        $region59: #{attention_forward.1} parent=39 // pred_region
          %305 = dma.done [#allocation10], 1024
        $region60: #{attention_forward.1} parent=39 // pred_fallthru
          _
        %s306 = sand.u32 %s37, 1
        %s307 = scalar_lea.sflag [#allocation4], %s306
        %s308 = sand.u32 %s37, 1
        %s309 = smul.addr %s308, 8
        %s310 = scalar_lea.vmem [#allocation3], %s309
        %p311 = pneg %p50
        %p312 = pneg %p47
        %p313 = pneg %p71
        %p314 = pneg %p68
        %p315 = pneg %p92
        %p316 = pneg %p89
        %p317 = pneg %p113
        %p318 = pneg %p110
        %p319 = pneg %p134
        %p320 = pneg %p131
        %p321 = pneg %p160
        %p322 = pneg %p157
        %s323 = sand.u32 %s147, 1
        %s324 = scalar_lea.sflag [#allocation5], %s323
        %s325 = sand.u32 %s147, 1
        %s326 = smul.addr %s325, 16
        %s327 = scalar_lea.vmem [#allocation12], %s326
        %p328 = pneg %p186
        %p329 = pneg %p183
        %s330 = sand.u32 %s173, 1
        %s331 = scalar_lea.sflag [#allocation14], %s330
        %s332 = sand.u32 %s173, 1
        %s333 = smul.addr %s332, 16
        %s334 = scalar_lea.vmem [#allocation13], %s333
        %v336 = vld [vmem:[%s285] sm:$0xf]
        %v337 = vld [vmem:[%s285 + $0x4] sm:$0xf]
        %v338 = vld [vmem:[#allocation6] sm:$0x1]
        %v339 = vld [vmem:[#allocation8] sm:$0x1]
        %v340 = vld [vmem:[#allocation9] sm:$0xff]
        %v341 = vld [vmem:[#allocation9 + $0x8] sm:$0xf]
        %v342 = vld [vmem:[#allocation9 + $0xc] sm:$0xff]
        %v343 = vld [vmem:[#allocation9 + $0x14] sm:$0xf]
        %v344 = vld [vmem:[#allocation9 + $0x18] sm:$0xff]
        %v345 = vld [vmem:[#allocation9 + $0x20] sm:$0xf]
        %v346 = vld [vmem:[#allocation9 + $0x24] sm:$0xff]
        %v347 = vld [vmem:[#allocation9 + $0x2c] sm:$0xf]
        %v348 = vld [vmem:[#allocation9 + $0x30] sm:$0xff]
        %v349 = vld [vmem:[#allocation9 + $0x38] sm:$0xf]
        %v350 = vld [vmem:[#allocation9 + $0x3c] sm:$0xff]
        %v351 = vld [vmem:[#allocation9 + $0x44] sm:$0xf]
        %v352 = vld [vmem:[#allocation9 + $0x48] sm:$0xff]
        %v353 = vld [vmem:[#allocation9 + $0x50] sm:$0xf]
        %v354 = vld [vmem:[#allocation9 + $0x54] sm:$0xff]
        %v355 = vld [vmem:[#allocation9 + $0x5c] sm:$0xf]
        %v356 = vld [vmem:[#allocation9 + $0x60] sm:$0xff]
        %v357 = vld [vmem:[#allocation9 + $0x68] sm:$0xf]
        %v358 = vld [vmem:[#allocation9 + $0x6c] sm:$0xff]
        %v359 = vld [vmem:[#allocation9 + $0x74] sm:$0xf]
        %v360 = vld [vmem:[#allocation9 + $0x78] sm:$0xff]
        %v361 = vld [vmem:[#allocation9 + $0x80] sm:$0xf]
        %v362 = vld [vmem:[#allocation9 + $0x84] sm:$0xff]
        %v363 = vld [vmem:[#allocation9 + $0x8c] sm:$0xf]
        %v364 = vld [vmem:[#allocation9 + $0x90] sm:$0xff]
        %v365 = vld [vmem:[#allocation9 + $0x98] sm:$0xf]
        %v366 = vld [vmem:[#allocation9 + $0x9c] sm:$0xff]
        %v367 = vld [vmem:[#allocation9 + $0xa4] sm:$0xf]
        %v368 = vld [vmem:[#allocation9 + $0xa8] sm:$0xff]
        %v369 = vld [vmem:[#allocation9 + $0xb0] sm:$0xf]
        %v370 = vld [vmem:[#allocation9 + $0xb4] sm:$0xff]
        %v371 = vld [vmem:[#allocation9 + $0xbc] sm:$0xf]
        %v372 = vld [vmem:[#allocation11] sm:$0xf]
        %v373 = vld [vmem:[#allocation11 + $0x4] sm:$0xf]
        %v374 = vld [vmem:[#allocation11 + $0x8] sm:$0xf]
        %v375 = vld [vmem:[#allocation11 + $0xc] sm:$0xf]
        %v376 = vld [vmem:[#allocation11 + $0x10] sm:$0xf]
        %v377 = vld [vmem:[#allocation11 + $0x14] sm:$0xf]
        %v378 = vld [vmem:[#allocation11 + $0x18] sm:$0xf]
        %v379 = vld [vmem:[#allocation11 + $0x1c] sm:$0xf]
        %v380 = vld [vmem:[#allocation11 + $0x20] sm:$0xf]
        %v381 = vld [vmem:[#allocation11 + $0x24] sm:$0xf]
        %v382 = vld [vmem:[#allocation11 + $0x28] sm:$0xf]
        %v383 = vld [vmem:[#allocation11 + $0x2c] sm:$0xf]
        %v384 = vld [vmem:[#allocation11 + $0x30] sm:$0xf]
        %v385 = vld [vmem:[#allocation11 + $0x34] sm:$0xf]
        %v386 = vld [vmem:[#allocation11 + $0x38] sm:$0xf]
        %v387 = vld [vmem:[#allocation11 + $0x3c] sm:$0xf]
        %v388 = vunpack.c.l.bf16 %v336
        %v389 = vunpack.c.l.bf16 %v337
        %390 = vadd.xlane.f32.xlu0 %v388
        %v391 = vpop.xlane.xlu0 %390
        %392 = vadd.xlane.f32.xlu0 %v389
        %v393 = vpop.xlane.xlu0 %392
        %v394 = vrcp.pop 128.0
        %v395 = vmul.f32 %v391, %v394
        %v396 = vmul.f32 %v393, %v394
        %v397 = vsub.f32 %v388, %v395
        %v398 = vsub.f32 %v389, %v396
        %v399 = vmul.f32 %v397, %v397
        %v400 = vmul.f32 %v398, %v398
        %401 = vadd.xlane.f32.xlu0 %v399
        %v402 = vpop.xlane.xlu0 %401
        %403 = vadd.xlane.f32.xlu0 %v400
        %v404 = vpop.xlane.xlu0 %403
        %v405 = vmul.f32 %v402, %v394
        %v406 = vmul.f32 %v404, %v394
        %v407 = vadd.f32 %v405, 1e-05
        %v408 = vadd.f32 %v406, 1e-05
        %v409 = vrsqrt.pop %v407
        %v410 = vrsqrt.pop %v408
        %v411 = vmul.f32 %v397, %v409
        %v412 = vmul.f32 %v398, %v410
        %v414 = vlaneseq
        %v415 = vshrl.u32 %v414, 7
        %v416 = vsub.s32 0, %v415
        %v417 = vrot.slane %v338, %v416
        %v419 = vmul.f32 %v411, %v417
        %v420 = vmul.f32 %v412, %v417
        %v422 = vlaneseq
        %v423 = vshrl.u32 %v422, 7
        %v424 = vsub.s32 0, %v423
        %v425 = vrot.slane %v339, %v424
        %v427 = vadd.f32 %v419, %v425
        %v428 = vadd.f32 %v420, %v425
        %v429 = vpack.c.bf16 %v428, %v427
        %v462 = vunpack.c.l.b16 %v340
        %v463 = vunpack.c.h.b16 %v340
        %v464 = vunpack.c.l.b16 %v341
        %v465 = vunpack.c.l.b16 %v342
        %v466 = vunpack.c.h.b16 %v342
        %v467 = vunpack.c.l.b16 %v343
        %v468 = vunpack.c.l.b16 %v344
        %v469 = vunpack.c.h.b16 %v344
        %v470 = vunpack.c.l.b16 %v345
        %v471 = vunpack.c.l.b16 %v346
        %v472 = vunpack.c.h.b16 %v346
        %v473 = vunpack.c.l.b16 %v347
        %v474 = vunpack.c.l.b16 %v348
        %v475 = vunpack.c.h.b16 %v348
        %v476 = vunpack.c.l.b16 %v349
        %v477 = vunpack.c.l.b16 %v350
        %v478 = vunpack.c.h.b16 %v350
        %v479 = vunpack.c.l.b16 %v351
        %v480 = vunpack.c.l.b16 %v352
        %v481 = vunpack.c.h.b16 %v352
        %v482 = vunpack.c.l.b16 %v353
        %v483 = vunpack.c.l.b16 %v354
        %v484 = vunpack.c.h.b16 %v354
        %v485 = vunpack.c.l.b16 %v355
        %v486 = vunpack.c.l.b16 %v356
        %v487 = vunpack.c.h.b16 %v356
        %v488 = vunpack.c.l.b16 %v357
        %v489 = vunpack.c.l.b16 %v358
        %v490 = vunpack.c.h.b16 %v358
        %v491 = vunpack.c.l.b16 %v359
        %v492 = vunpack.c.l.b16 %v360
        %v493 = vunpack.c.h.b16 %v360
        %v494 = vunpack.c.l.b16 %v361
        %v495 = vunpack.c.l.b16 %v362
        %v496 = vunpack.c.h.b16 %v362
        %v497 = vunpack.c.l.b16 %v363
        %v498 = vunpack.c.l.b16 %v364
        %v499 = vunpack.c.h.b16 %v364
        %v500 = vunpack.c.l.b16 %v365
        %v501 = vunpack.c.l.b16 %v366
        %v502 = vunpack.c.h.b16 %v366
        %v503 = vunpack.c.l.b16 %v367
        %v504 = vunpack.c.l.b16 %v368
        %v505 = vunpack.c.h.b16 %v368
        %v506 = vunpack.c.l.b16 %v369
        %v507 = vunpack.c.l.b16 %v370
        %v508 = vunpack.c.h.b16 %v370
        %v509 = vunpack.c.l.b16 %v371
        %v510 = vpack.c.b16 %v465, %v462
        %v511 = vpack.c.b16 %v466, %v463
        %v512 = vpack.c.b16 %v467, %v464
        %v513 = vpack.c.b16 %v471, %v468
        %v514 = vpack.c.b16 %v472, %v469
        %v515 = vpack.c.b16 %v473, %v470
        %v516 = vpack.c.b16 %v477, %v474
        %v517 = vpack.c.b16 %v478, %v475
        %v518 = vpack.c.b16 %v479, %v476
        %v519 = vpack.c.b16 %v483, %v480
        %v520 = vpack.c.b16 %v484, %v481
        %v521 = vpack.c.b16 %v485, %v482
        %v522 = vpack.c.b16 %v489, %v486
        %v523 = vpack.c.b16 %v490, %v487
        %v524 = vpack.c.b16 %v491, %v488
        %v525 = vpack.c.b16 %v495, %v492
        %v526 = vpack.c.b16 %v496, %v493
        %v527 = vpack.c.b16 %v497, %v494
        %v528 = vpack.c.b16 %v501, %v498
        %v529 = vpack.c.b16 %v502, %v499
        %v530 = vpack.c.b16 %v503, %v500
        %v531 = vpack.c.b16 %v507, %v504
        %v532 = vpack.c.b16 %v508, %v505
        %v533 = vpack.c.b16 %v509, %v506
        %558 = vmatprep.subr.bf16.mxu0 %v511
        %559 = vmatpush1.bf16.msra.mxu0 %v510
        %560 = vmatprep.subr.bf16.mxu0 %v514
        %561 = vmatpush1.bf16.msra.mxu0 %v513
        %562 = vmatprep.subr.bf16.mxu0 %v517
        %563 = vmatpush1.bf16.msra.mxu0 %v516
        %564 = vmatprep.subr.bf16.mxu0 %v520
        %565 = vmatpush1.bf16.msra.mxu0 %v519
        %566 = vmatprep.subr.bf16.mxu0 %v523
        %567 = vmatpush1.bf16.msra.mxu0 %v522
        %568 = vmatprep.subr.bf16.mxu0 %v526
        %569 = vmatpush1.bf16.msra.mxu0 %v525
        %570 = vmatprep.subr.bf16.mxu0 %v529
        %571 = vmatpush1.bf16.msra.mxu0 %v528
        %572 = vmatprep.subr.bf16.mxu0 %v532
        %573 = vmatpush1.bf16.msra.mxu0 %v531
        %574 = vmatprep.subr.bf16.mxu0 0
        %575 = vmatpush1.bf16.msra.mxu0 0
        %576 = vmatprep.subr.bf16.mxu0 0
        %577 = vmatpush1.bf16.msra.mxu0 0
        %578 = vmatprep.subr.bf16.mxu0 0
        %579 = vmatpush1.bf16.msra.mxu0 0
        %580 = vmatprep.subr.bf16.mxu0 0
        %581 = vmatpush1.bf16.msra.mxu0 0
        %582 = vmatprep.subr.bf16.mxu0 0
        %583 = vmatpush1.bf16.msra.mxu0 0
        %584 = vmatprep.subr.bf16.mxu0 0
        %585 = vmatpush1.bf16.msra.mxu0 0
        %586 = vmatprep.subr.bf16.mxu0 0
        %587 = vmatpush1.bf16.msra.mxu0 0
        %588 = vmatprep.subr.bf16.mxu0 0
        %589 = vmatpush1.bf16.msra.mxu0 0
        %590 = vmatprep.mubr.bf16.mxu0 0
        %591 = vmatmul.mubr.bf16.gmra.mrb[0].mxu0 %v429
        %v592 = vpop.f32.mrb[0].mxu0
        %v593 = vadd.f32 0.0, %v592
        %v594 = vpop.f32.mrb[0].mxu0
        %v595 = vadd.f32 0.0, %v594
        %v596 = vpop.f32.mrb[0].mxu0
        %v597 = vadd.f32 0.0, %v596
        %v598 = vpop.f32.mrb[0].mxu0
        %v599 = vadd.f32 0.0, %v598
        %600 = vdwg.mxu0
        %601 = vmatprep.subr.bf16.mxu0 0
        %602 = vmatpush1.bf16.msra.mxu0 %v512
        %603 = vmatprep.subr.bf16.mxu0 0
        %604 = vmatpush1.bf16.msra.mxu0 %v515
        %605 = vmatprep.subr.bf16.mxu0 0
        %606 = vmatpush1.bf16.msra.mxu0 %v518
        %607 = vmatprep.subr.bf16.mxu0 0
        %608 = vmatpush1.bf16.msra.mxu0 %v521
        %609 = vmatprep.subr.bf16.mxu0 0
        %610 = vmatpush1.bf16.msra.mxu0 %v524
        %611 = vmatprep.subr.bf16.mxu0 0
        %612 = vmatpush1.bf16.msra.mxu0 %v527
        %613 = vmatprep.subr.bf16.mxu0 0
        %614 = vmatpush1.bf16.msra.mxu0 %v530
        %615 = vmatprep.subr.bf16.mxu0 0
        %616 = vmatpush1.bf16.msra.mxu0 %v533
        %617 = vmatprep.subr.bf16.mxu0 0
        %618 = vmatpush1.bf16.msra.mxu0 0
        %619 = vmatprep.subr.bf16.mxu0 0
        %620 = vmatpush1.bf16.msra.mxu0 0
        %621 = vmatprep.subr.bf16.mxu0 0
        %622 = vmatpush1.bf16.msra.mxu0 0
        %623 = vmatprep.subr.bf16.mxu0 0
        %624 = vmatpush1.bf16.msra.mxu0 0
        %625 = vmatprep.subr.bf16.mxu0 0
        %626 = vmatpush1.bf16.msra.mxu0 0
        %627 = vmatprep.subr.bf16.mxu0 0
        %628 = vmatpush1.bf16.msra.mxu0 0
        %629 = vmatprep.subr.bf16.mxu0 0
        %630 = vmatpush1.bf16.msra.mxu0 0
        %631 = vmatprep.subr.bf16.mxu0 0
        %632 = vmatpush1.bf16.msra.mxu0 0
        %633 = vmatprep.mubr.bf16.mxu0 0
        %634 = vmatmul.mubr.bf16.gmra.mrb[0].mxu0 %v429
        %v635 = vpop.f32.mrb[0].mxu0
        %v636 = vadd.f32 0.0, %v635
        %v637 = vpop.f32.mrb[0].mxu0
        %v638 = vpop.f32.mrb[0].mxu0
        %v639 = vadd.f32 0.0, %v638
        %v640 = vpop.f32.mrb[0].mxu0
        %641 = vdwg.mxu0
        %v642 = vpack.c.bf16 %v597, %v593
        %v643 = vpack.c.bf16 %v599, %v595
        %v644 = vpack.c.bf16 %v639, %v636
        %v646 = vunpack.c.l.b16 %v644
        %v647 = vunpack.c.h.b16 %v644
        %v648 = vpack.c.b16 %v646, %v646
        %v649 = vpack.c.b16 %v647, %v647
        %vm652 = vcmask 519168
        %653 = vst.msk [vmem:[%s334] sm:$0xf] %vm652, %v648
        %654 = vst.msk [vmem:[%s334 + $0x4] sm:$0xf] %vm652, %v649
        %vm655 = vcmask 523264
        %v657 = vsel %vm655, %v642, 0
        %v660 = vsel %vm655, %v643, 0
        %662 = vmatprep.subr.bf16.mxu0 0
        %663 = vmatpush1.bf16.xpose.msra.mxu0 %v660
        %664 = vmatprep.subr.bf16.mxu0 0
        %665 = vmatpush1.bf16.xpose.msra.mxu0 0
        %666 = vmatprep.subr.bf16.mxu0 0
        %667 = vmatpush1.bf16.xpose.msra.mxu0 0
        %668 = vmatprep.subr.bf16.mxu0 0
        %669 = vmatpush1.bf16.xpose.msra.mxu0 0
        %670 = vmatprep.subr.bf16.mxu0 0
        %671 = vmatpush1.bf16.xpose.msra.mxu0 0
        %672 = vmatprep.subr.bf16.mxu0 0
        %673 = vmatpush1.bf16.xpose.msra.mxu0 0
        %674 = vmatprep.subr.bf16.mxu0 0
        %675 = vmatpush1.bf16.xpose.msra.mxu0 0
        %676 = vmatprep.subr.bf16.mxu0 0
        %677 = vmatpush1.bf16.xpose.msra.mxu0 0
        %678 = vmatprep.subr.bf16.mxu0 0
        %679 = vmatpush1.bf16.xpose.msra.mxu0 0
        %680 = vmatprep.subr.bf16.mxu0 0
        %681 = vmatpush1.bf16.xpose.msra.mxu0 0
        %682 = vmatprep.subr.bf16.mxu0 0
        %683 = vmatpush1.bf16.xpose.msra.mxu0 0
        %684 = vmatprep.subr.bf16.mxu0 0
        %685 = vmatpush1.bf16.xpose.msra.mxu0 0
        %686 = vmatprep.subr.bf16.mxu0 0
        %687 = vmatpush1.bf16.xpose.msra.mxu0 0
        %688 = vmatprep.subr.bf16.mxu0 0
        %689 = vmatpush1.bf16.xpose.msra.mxu0 0
        %690 = vmatprep.subr.bf16.mxu0 0
        %691 = vmatpush1.bf16.xpose.msra.mxu0 0
        %692 = vmatprep.subr.bf16.mxu0 0
        %693 = vmatpush1.bf16.xpose.msra.mxu0 0
        %694 = vmatprep.mubr.bf16.mxu0 0
        %695 = vmatmul.mubr.bf16.gmra.mrb[0].mxu0 %v657
        %v696 = vpop.f32.mrb[0].mxu0
        %v697 = vadd.f32 0.0, %v696
        %v698 = vpop.f32.mrb[0].mxu0
        %v699 = vpop.f32.mrb[0].mxu0
        %v700 = vadd.f32 0.0, %v699
        %v701 = vpop.f32.mrb[0].mxu0
        %702 = vdwg.mxu0
        %vm703 = vcmask 130048
        %v704 = vsel %vm703, %v697, -inf
        %705 = vmax.xlane.f32.xlu0 %v704
        %v706 = vpop.xlane.xlu0 %705
        %v707 = vsel %vm703, %v700, -inf
        %708 = vmax.xlane.f32.xlu0 %v707
        %v709 = vpop.xlane.xlu0 %708
        %v710 = vsub.f32 %v697, %v706
        %v711 = vsub.f32 %v700, %v709
        %v712 = vmul.f32 %v710, 1.442695
        %v713 = vpow.pop %v712
        %v714 = vmul.f32 %v711, 1.442695
        %v715 = vpow.pop %v714
        %v716 = vsel %vm703, %v713, 0.0
        %717 = vadd.xlane.f32.xlu0 %v716
        %v718 = vpop.xlane.xlu0 %717
        %v719 = vsel %vm703, %v715, 0.0
        %720 = vadd.xlane.f32.xlu0 %v719
        %v721 = vpop.xlane.xlu0 %720
        %v722 = vpack.c.bf16 %v715, %v713
        %v724 = vsel %vm703, %v722, 0
        %726 = vmatprep.subr.bf16.mxu0 0
        %727 = vmatpush1.bf16.msra.mxu0 %v644
        %728 = vmatprep.subr.bf16.mxu0 0
        %729 = vmatpush1.bf16.msra.mxu0 0
        %730 = vmatprep.subr.bf16.mxu0 0
        %731 = vmatpush1.bf16.msra.mxu0 0
        %732 = vmatprep.subr.bf16.mxu0 0
        %733 = vmatpush1.bf16.msra.mxu0 0
        %734 = vmatprep.subr.bf16.mxu0 0
        %735 = vmatpush1.bf16.msra.mxu0 0
        %736 = vmatprep.subr.bf16.mxu0 0
        %737 = vmatpush1.bf16.msra.mxu0 0
        %738 = vmatprep.subr.bf16.mxu0 0
        %739 = vmatpush1.bf16.msra.mxu0 0
        %740 = vmatprep.subr.bf16.mxu0 0
        %741 = vmatpush1.bf16.msra.mxu0 0
        %742 = vmatprep.subr.bf16.mxu0 0
        %743 = vmatpush1.bf16.msra.mxu0 0
        %744 = vmatprep.subr.bf16.mxu0 0
        %745 = vmatpush1.bf16.msra.mxu0 0
        %746 = vmatprep.subr.bf16.mxu0 0
        %747 = vmatpush1.bf16.msra.mxu0 0
        %748 = vmatprep.subr.bf16.mxu0 0
        %749 = vmatpush1.bf16.msra.mxu0 0
        %750 = vmatprep.subr.bf16.mxu0 0
        %751 = vmatpush1.bf16.msra.mxu0 0
        %752 = vmatprep.subr.bf16.mxu0 0
        %753 = vmatpush1.bf16.msra.mxu0 0
        %754 = vmatprep.subr.bf16.mxu0 0
        %755 = vmatpush1.bf16.msra.mxu0 0
        %756 = vmatprep.subr.bf16.mxu0 0
        %757 = vmatpush1.bf16.msra.mxu0 0
        %758 = vmatprep.mubr.bf16.mxu0 0
        %759 = vmatmul.mubr.bf16.gmra.mrb[0].mxu0 %v724
        %v760 = vpop.f32.mrb[0].mxu0
        %v761 = vadd.f32 0.0, %v760
        %v762 = vpop.f32.mrb[0].mxu0
        %v763 = vpop.f32.mrb[0].mxu0
        %v764 = vadd.f32 0.0, %v763
        %v765 = vpop.f32.mrb[0].mxu0
        %766 = vdwg.mxu0
        %v767 = vrcp.pop %v718
        %v768 = vmul.f32 1.0, %v767
        %v769 = vrcp.pop %v721
        %v770 = vmul.f32 1.0, %v769
        %v771 = vmul.f32 %v761, %v768
        %v772 = vmul.f32 %v764, %v770
        %v773 = vpack.c.bf16 %v772, %v771
        %774 = vst.msk [vmem:[#allocation2] sm:$0xff] %vm655, %v773
        %775 = vrot.lane.b32.xlu0 %v648, 64
        %v776 = vpop.permute.xlu0 %775
        %777 = vrot.lane.b32.xlu0 %v649, 64
        %v778 = vpop.permute.xlu0 %777
        %s781 = scalar_lea.vmem %s334, 8 [#allocation13]
        %782 = vst.msk [vmem:[%s781] sm:$0xf] %vm652, %v776
        %783 = vst.msk [vmem:[%s781 + $0x4] sm:$0xf] %vm652, %v778
        %785 = vrot.lane.b32.xlu0 %v642, 64
        %v786 = vpop.permute.xlu0 %785
        %788 = vrot.lane.b32.xlu0 %v643, 64
        %v789 = vpop.permute.xlu0 %788
        %v791 = vsel %vm655, %v786, 0
        %v794 = vsel %vm655, %v789, 0
        %796 = vmatprep.subr.bf16.mxu0 0
        %797 = vmatpush1.bf16.xpose.msra.mxu0 %v794
        %798 = vmatprep.subr.bf16.mxu0 0
        %799 = vmatpush1.bf16.xpose.msra.mxu0 0
        %800 = vmatprep.subr.bf16.mxu0 0
        %801 = vmatpush1.bf16.xpose.msra.mxu0 0
        %802 = vmatprep.subr.bf16.mxu0 0
        %803 = vmatpush1.bf16.xpose.msra.mxu0 0
        %804 = vmatprep.subr.bf16.mxu0 0
        %805 = vmatpush1.bf16.xpose.msra.mxu0 0
        %806 = vmatprep.subr.bf16.mxu0 0
        %807 = vmatpush1.bf16.xpose.msra.mxu0 0
        %808 = vmatprep.subr.bf16.mxu0 0
        %809 = vmatpush1.bf16.xpose.msra.mxu0 0
        %810 = vmatprep.subr.bf16.mxu0 0
        %811 = vmatpush1.bf16.xpose.msra.mxu0 0
        %812 = vmatprep.subr.bf16.mxu0 0
        %813 = vmatpush1.bf16.xpose.msra.mxu0 0
        %814 = vmatprep.subr.bf16.mxu0 0
        %815 = vmatpush1.bf16.xpose.msra.mxu0 0
        %816 = vmatprep.subr.bf16.mxu0 0
        %817 = vmatpush1.bf16.xpose.msra.mxu0 0
        %818 = vmatprep.subr.bf16.mxu0 0
        %819 = vmatpush1.bf16.xpose.msra.mxu0 0
        %820 = vmatprep.subr.bf16.mxu0 0
        %821 = vmatpush1.bf16.xpose.msra.mxu0 0
        %822 = vmatprep.subr.bf16.mxu0 0
        %823 = vmatpush1.bf16.xpose.msra.mxu0 0
        %824 = vmatprep.subr.bf16.mxu0 0
        %825 = vmatpush1.bf16.xpose.msra.mxu0 0
        %826 = vmatprep.subr.bf16.mxu0 0
        %827 = vmatpush1.bf16.xpose.msra.mxu0 0
        %828 = vmatprep.mubr.bf16.mxu0 0
        %829 = vmatmul.mubr.bf16.gmra.mrb[0].mxu0 %v791
        %v830 = vpop.f32.mrb[0].mxu0
        %v831 = vadd.f32 0.0, %v830
        %v832 = vpop.f32.mrb[0].mxu0
        %v833 = vpop.f32.mrb[0].mxu0
        %v834 = vadd.f32 0.0, %v833
        %v835 = vpop.f32.mrb[0].mxu0
        %836 = vdwg.mxu0
        %v837 = vsel %vm703, %v831, -inf
        %838 = vmax.xlane.f32.xlu0 %v837
        %v839 = vpop.xlane.xlu0 %838
        %v840 = vsel %vm703, %v834, -inf
        %841 = vmax.xlane.f32.xlu0 %v840
        %v842 = vpop.xlane.xlu0 %841
        %v843 = vsub.f32 %v831, %v839
        %v844 = vsub.f32 %v834, %v842
        %v845 = vmul.f32 %v843, 1.442695
        %v846 = vpow.pop %v845
        %v847 = vmul.f32 %v844, 1.442695
        %v848 = vpow.pop %v847
        %v849 = vsel %vm703, %v846, 0.0
        %850 = vadd.xlane.f32.xlu0 %v849
        %v851 = vpop.xlane.xlu0 %850
        %v852 = vsel %vm703, %v848, 0.0
        %853 = vadd.xlane.f32.xlu0 %v852
        %v854 = vpop.xlane.xlu0 %853
        %v855 = vpack.c.bf16 %v848, %v846
        %856 = vrot.lane.b32.xlu0 %v644, 64
        %v857 = vpop.permute.xlu0 %856
        %v860 = vsel %vm703, %v855, 0
        %862 = vmatprep.subr.bf16.mxu0 0
        %863 = vmatpush1.bf16.msra.mxu0 %v857
        %864 = vmatprep.subr.bf16.mxu0 0
        %865 = vmatpush1.bf16.msra.mxu0 0
        %866 = vmatprep.subr.bf16.mxu0 0
        %867 = vmatpush1.bf16.msra.mxu0 0
        %868 = vmatprep.subr.bf16.mxu0 0
        %869 = vmatpush1.bf16.msra.mxu0 0
        %870 = vmatprep.subr.bf16.mxu0 0
        %871 = vmatpush1.bf16.msra.mxu0 0
        %872 = vmatprep.subr.bf16.mxu0 0
        %873 = vmatpush1.bf16.msra.mxu0 0
        %874 = vmatprep.subr.bf16.mxu0 0
        %875 = vmatpush1.bf16.msra.mxu0 0
        %876 = vmatprep.subr.bf16.mxu0 0
        %877 = vmatpush1.bf16.msra.mxu0 0
        %878 = vmatprep.subr.bf16.mxu0 0
        %879 = vmatpush1.bf16.msra.mxu0 0
        %880 = vmatprep.subr.bf16.mxu0 0
        %881 = vmatpush1.bf16.msra.mxu0 0
        %882 = vmatprep.subr.bf16.mxu0 0
        %883 = vmatpush1.bf16.msra.mxu0 0
        %884 = vmatprep.subr.bf16.mxu0 0
        %885 = vmatpush1.bf16.msra.mxu0 0
        %886 = vmatprep.subr.bf16.mxu0 0
        %887 = vmatpush1.bf16.msra.mxu0 0
        %888 = vmatprep.subr.bf16.mxu0 0
        %889 = vmatpush1.bf16.msra.mxu0 0
        %890 = vmatprep.subr.bf16.mxu0 0
        %891 = vmatpush1.bf16.msra.mxu0 0
        %892 = vmatprep.subr.bf16.mxu0 0
        %893 = vmatpush1.bf16.msra.mxu0 0
        %894 = vmatprep.mubr.bf16.mxu0 0
        %895 = vmatmul.mubr.bf16.gmra.mrb[0].mxu0 %v860
        %v896 = vpop.f32.mrb[0].mxu0
        %v897 = vadd.f32 0.0, %v896
        %v898 = vpop.f32.mrb[0].mxu0
        %v899 = vpop.f32.mrb[0].mxu0
        %v900 = vadd.f32 0.0, %v899
        %v901 = vpop.f32.mrb[0].mxu0
        %902 = vdwg.mxu0
        %v903 = vrcp.pop %v851
        %v904 = vmul.f32 1.0, %v903
        %v905 = vrcp.pop %v854
        %v906 = vmul.f32 1.0, %v905
        %v907 = vmul.f32 %v897, %v904
        %v908 = vmul.f32 %v900, %v906
        %v909 = vpack.c.bf16 %v908, %v907
        %911 = vrot.lane.b32.xlu0 %v909, 64
        %v912 = vpop.permute.xlu0 %911
        %vm914 = vcmask 1048064
        %915 = vst.msk [vmem:[#allocation2] sm:$0xff] %vm914, %v912
        %v916 = vld [vmem:[#allocation2] sm:$0xff]
        %v933 = vunpack.c.l.b16 %v372
        %v934 = vunpack.c.l.b16 %v373
        %v935 = vunpack.c.l.b16 %v374
        %v936 = vunpack.c.l.b16 %v375
        %v937 = vunpack.c.l.b16 %v376
        %v938 = vunpack.c.l.b16 %v377
        %v939 = vunpack.c.l.b16 %v378
        %v940 = vunpack.c.l.b16 %v379
        %v941 = vunpack.c.l.b16 %v380
        %v942 = vunpack.c.l.b16 %v381
        %v943 = vunpack.c.l.b16 %v382
        %v944 = vunpack.c.l.b16 %v383
        %v945 = vunpack.c.l.b16 %v384
        %v946 = vunpack.c.l.b16 %v385
        %v947 = vunpack.c.l.b16 %v386
        %v948 = vunpack.c.l.b16 %v387
        %v949 = vpack.c.b16 %v934, %v933
        %v950 = vpack.c.b16 %v936, %v935
        %v951 = vpack.c.b16 %v938, %v937
        %v952 = vpack.c.b16 %v940, %v939
        %v953 = vpack.c.b16 %v942, %v941
        %v954 = vpack.c.b16 %v944, %v943
        %v955 = vpack.c.b16 %v946, %v945
        %v956 = vpack.c.b16 %v948, %v947
        %965 = vmatprep.subr.bf16.mxu0 0
        %966 = vmatpush1.bf16.msra.mxu0 %v949
        %967 = vmatprep.subr.bf16.mxu0 0
        %968 = vmatpush1.bf16.msra.mxu0 %v950
        %969 = vmatprep.subr.bf16.mxu0 0
        %970 = vmatpush1.bf16.msra.mxu0 %v951
        %971 = vmatprep.subr.bf16.mxu0 0
        %972 = vmatpush1.bf16.msra.mxu0 %v952
        %973 = vmatprep.subr.bf16.mxu0 0
        %974 = vmatpush1.bf16.msra.mxu0 %v953
        %975 = vmatprep.subr.bf16.mxu0 0
        %976 = vmatpush1.bf16.msra.mxu0 %v954
        %977 = vmatprep.subr.bf16.mxu0 0
        %978 = vmatpush1.bf16.msra.mxu0 %v955
        %979 = vmatprep.subr.bf16.mxu0 0
        %980 = vmatpush1.bf16.msra.mxu0 %v956
        %981 = vmatprep.subr.bf16.mxu0 0
        %982 = vmatpush1.bf16.msra.mxu0 0
        %983 = vmatprep.subr.bf16.mxu0 0
        %984 = vmatpush1.bf16.msra.mxu0 0
        %985 = vmatprep.subr.bf16.mxu0 0
        %986 = vmatpush1.bf16.msra.mxu0 0
        %987 = vmatprep.subr.bf16.mxu0 0
        %988 = vmatpush1.bf16.msra.mxu0 0
        %989 = vmatprep.subr.bf16.mxu0 0
        %990 = vmatpush1.bf16.msra.mxu0 0
        %991 = vmatprep.subr.bf16.mxu0 0
        %992 = vmatpush1.bf16.msra.mxu0 0
        %993 = vmatprep.subr.bf16.mxu0 0
        %994 = vmatpush1.bf16.msra.mxu0 0
        %995 = vmatprep.subr.bf16.mxu0 0
        %996 = vmatpush1.bf16.msra.mxu0 0
        %997 = vmatprep.mubr.bf16.mxu0 0
        %998 = vmatmul.mubr.bf16.gmra.mrb[0].mxu0 %v916
        %v999 = vpop.f32.mrb[0].mxu0
        %v1000 = vadd.f32 0.0, %v999
        %v1001 = vpop.f32.mrb[0].mxu0
        %v1002 = vpop.f32.mrb[0].mxu0
        %v1003 = vadd.f32 0.0, %v1002
        %v1004 = vpop.f32.mrb[0].mxu0
        %1005 = vdwg.mxu0
        %1006 = vst [vmem:[%s327] sm:$0xff] %v1000
        %1007 = vst [vmem:[%s327 + $0x8] sm:$0xff] %v1003
        %s1008 = sand.u32 %s147, 1
        %s1009 = scalar_lea.sflag [#allocation5], %s1008
        %s1010 = sand.u32 %s147, 1
        %s1011 = smul.addr %s1010, 16
        %s1012 = scalar_lea.vmem [#allocation12], %s1011
        %s1013 = sand.u32 %s173, 1
        %s1014 = scalar_lea.sflag [#allocation14], %s1013
        %s1015 = sand.u32 %s173, 1
        %s1016 = smul.addr %s1015, 16
        %s1017 = scalar_lea.vmem [#allocation13], %s1016
        // Predicated region
        $region61: #{attention_forward.1} parent=39 // pred_check
          %p1018 = pneg %p157
        $region62: #{attention_forward.1} parent=39 // pred_check_branch
          %1020 = sbr.rel (%p1018) target = $region64
        $region63: #{attention_forward.1} parent=39 // pred_region
          %s1022 = ssub.s32 256, 256
          %1023 = vsyncadd %s1009, %s1022
          %s1024 = smul.addr %s29, 2
          %s1025 = smul.addr %s1024, 128
          %s1026 = scalar_lea.hbm %s5, %s1025
          %s1027 = sshll.u32 %s1012, 4
          %s1028 = int_to_ptr.vmem [resolvable:$true] %s1027
          %1033 = dma.vmem_to_hbm [thread:$0]  %s1028, 256, %s1026, %s1009, 128, 128, 8
        $region64: #{attention_forward.1} parent=39 // pred_fallthru
          _
        // Predicated region
        $region65: #{attention_forward.1} parent=39 // pred_check
          %p1034 = pneg %p183
        $region66: #{attention_forward.1} parent=39 // pred_check_branch
          %1036 = sbr.rel (%p1034) target = $region68
        $region67: #{attention_forward.1} parent=39 // pred_region
          %s1038 = ssub.s32 256, 256
          %1039 = vsyncadd %s1014, %s1038
          %s1040 = smul.addr %s29, 4
          %s1041 = smul.addr %s1040, 64
          %s1042 = scalar_lea.hbm %s6, %s1041
          %s1043 = sshll.u32 %s1017, 4
          %s1044 = int_to_ptr.vmem [resolvable:$true] %s1043
          %1049 = dma.vmem_to_hbm [thread:$0]  %s1044, 256, %s1042, %s1014, 64, 64, 4
        $region68: #{attention_forward.1} parent=39 // pred_fallthru
          _
      $region40: #{attention_forward.1} parent=5 // pred_fallthru
        _
      %p1050 = scmp.le.s32.totalorder 2, %s24
      // Predicated region
      $region69: #{attention_forward.1} parent=5 // pred_check
        %p1051 = pneg %p1050
      $region70: #{attention_forward.1} parent=5 // pred_check_branch
        %1053 = sbr.rel (%p1051) target = $region72
      $region71: #{attention_forward.1} parent=5 // pred_region
        %s1054 = ssub.s32 %s24, 2
        // Predicated region
        $region73: #{attention_forward.1} parent=71 // pred_check
          %p1055 = pneg %p163
        $region74: #{attention_forward.1} parent=71 // pred_check_branch
          %1057 = sbr.rel (%p1055) target = $region76
        $region75: #{attention_forward.1} parent=71 // pred_region
          %s1058 = sand.u32 %s148, 1
          %s1059 = scalar_lea.sflag [#allocation5], %s1058
          %s1060 = sand.u32 %s148, 1
          %s1061 = smul.addr %s1060, 16
          %s1062 = scalar_lea.vmem [#allocation12], %s1061
          %1063 = dma.done %s1059, 256
        $region76: #{attention_forward.1} parent=71 // pred_fallthru
          _
        // Predicated region
        $region77: #{attention_forward.1} parent=71 // pred_check
          %p1064 = pneg %p189
        $region78: #{attention_forward.1} parent=71 // pred_check_branch
          %1066 = sbr.rel (%p1064) target = $region80
        $region79: #{attention_forward.1} parent=71 // pred_region
          %s1067 = sand.u32 %s174, 1
          %s1068 = scalar_lea.sflag [#allocation14], %s1067
          %s1069 = sand.u32 %s174, 1
          %s1070 = smul.addr %s1069, 16
          %s1071 = scalar_lea.vmem [#allocation13], %s1070
          %1072 = dma.done %s1068, 256
        $region80: #{attention_forward.1} parent=71 // pred_fallthru
          _
      $region72: #{attention_forward.1} parent=5 // pred_fallthru
        _
    $region6: #{attention_forward.1} parent=1 // loop_footer
      %s28 = sadd.s32 1, %s24
    $region7: #{attention_forward.1} parent=1 // loop_footer_branch
      %23 = sbr.rel target = $region3
    $region8: #{attention_forward.1} parent=1 // loop_exit
      _
    %1073 = vsyncpa [#allocation4], 1
    %s1074 = scalar_lea.sflag [#allocation4], 1
    %1075 = vsyncpa %s1074, 1
    %1076 = vsyncpa [#allocation7], 1
    %1077 = vsyncpa [#allocation10], 1
    %1078 = vsyncpa [#allocation5], 1
    %s1079 = scalar_lea.sflag [#allocation5], 1
    %1080 = vsyncpa %s1079, 1
    %1081 = vsyncpa [#allocation14], 1
    %s1082 = scalar_lea.sflag [#allocation14], 1
    %1083 = vsyncpa %s1082, 1

</llo_original>
